<compile_context>
chip_gen: v6e
topology: v6e:2x2x1
jax: 0.10.0
libtpu: 0.0.40
codegen_flags: <defaults>
</compile_context>

<pallas_src>
import functools
import math

import jax
import jax.numpy as jnp
from jax.experimental import pallas as pl
from jax.experimental.pallas import tpu as pltpu

_LOG_2PI = math.log(2.0 * math.pi)
_LOG_2 = math.log(2.0)


def _softplus(x):
    # single-branch numerically stable softplus: max(x, 0) + log1p(exp(-|x|))
    return jnp.maximum(x, 0.0) + jnp.log1p(jnp.exp(-jnp.abs(x)))


def _round_up(x, m):
    return ((x + m - 1) // m) * m


def _cdiv(a, b):
    return (a + b - 1) // b


def _tanh_bf16_default():
    # bf16 tanh rides the single EUP slot at ~2x throughput on v6e/v7x.
    # v5e (and older) lack bf16 EUP/VPU support, so keep f32 tanh there.
    try:
        kind = jax.devices()[0].device_kind.lower()
    except Exception:
        return False
    return ("v6" in kind) or ("v7" in kind)


def ac_policy_kernel(obs_ref, eps_ref,
                     w1_ref, b1_ref, w2_ref, b2_ref,
                     whead_ref, bhead_ref,
                     aloc_ref, ascale_ref, logas_ref,
                     out_ref, *, tanh_bf16):
    A = eps_ref.shape[1]

    # --- dist_param_model: 2-layer tanh MLP with fused loc/log_std head ---
    # bf16 MXU operands, f32 accumulation; hidden tanh in bf16 on v6e/v7x.
    obs = obs_ref[...]                                              # (TB, O) bf16
    h1_acc = jnp.dot(obs, w1_ref[...],
                     preferred_element_type=jnp.float32) + b1_ref[...]
    if tanh_bf16:
        h1 = jnp.tanh(h1_acc.astype(jnp.bfloat16))
    else:
        h1 = jnp.tanh(h1_acc).astype(jnp.bfloat16)
    h2_acc = jnp.dot(h1, w2_ref[...],
                     preferred_element_type=jnp.float32) + b2_ref[...]
    if tanh_bf16:
        h2 = jnp.tanh(h2_acc.astype(jnp.bfloat16))
    else:
        h2 = jnp.tanh(h2_acc).astype(jnp.bfloat16)
    head = jnp.dot(h2, whead_ref[...],
                   preferred_element_type=jnp.float32) + bhead_ref[...]

    loc = head[:, :A]
    log_std = head[:, A:]
    # TODO(synk): some ACPolicy dist_param_models clamp log_std; the spec does not.
    scale = jnp.exp(log_std)

    # --- Normal(loc, scale).rsample() (reparameterized) ---
    eps = eps_ref[...]                                              # (TB, A) f32
    z = loc + scale * eps

    # --- AffineTransform(a_loc, a_scale) then TanhTransform ---
    y = aloc_ref[...] + ascale_ref[...] * z
    action = jnp.tanh(y)

    # --- log-prob, reduced over the action axis in-kernel ---
    base_lp = -0.5 * eps * eps - log_std - 0.5 * _LOG_2PI           # Normal.log_prob(z)
    tanh_ladj = 2.0 * (_LOG_2 - y - _softplus(-2.0 * y))            # log(1 - tanh(y)^2)
    lp_dim = base_lp - logas_ref[...] - tanh_ladj                   # includes log|a_scale|
    lp = jnp.sum(lp_dim, axis=-1, keepdims=True)                    # (TB, 1)

    # Single merged output block: [action | log_prob].
    out_ref[:, :A] = action
    out_ref[:, A:] = lp


def ac_policy_forward(obs, eps, params, a_lower, a_upper, *,
                      tile_b=2048, tanh_bf16=None):
    """Returns (action (B,A), log_prob (B,)) == forward(obs, return_log_prob=True)."""
    B, OBS = obs.shape
    HID = params["w1"].shape[1]
    A = params["w_loc"].shape[1]
    if tanh_bf16 is None:
        tanh_bf16 = _tanh_bf16_default()

    # Affine transform parameters (per-call constants, as in __init__).
    a_loc = ((a_lower + a_upper) / 2.0).reshape(1, A).astype(jnp.float32)
    a_scale = (a_loc - a_lower.reshape(1, A)).astype(jnp.float32)
    # NOTE: a_lower == a_upper would give a_scale == 0 and log|a_scale| = -inf.
    log_a_scale = jnp.log(jnp.abs(a_scale))                         # (1, A), folded in-kernel

    # Fuse loc / log_std heads into a single (HID, 2A) matmul.
    w_head = jnp.concatenate([params["w_loc"], params["w_logstd"]], axis=1)
    b_head = jnp.concatenate([params["b_loc"], params["b_logstd"]]).reshape(1, 2 * A)

    # Pre-cast MXU operands to bf16; keep biases / noise / affine constants f32.
    obs_bf = obs.astype(jnp.bfloat16)
    w1 = params["w1"].astype(jnp.bfloat16)
    w2 = params["w2"].astype(jnp.bfloat16)
    w_head = w_head.astype(jnp.bfloat16)
    b1 = params["b1"].reshape(1, HID).astype(jnp.float32)
    b2 = params["b2"].reshape(1, HID).astype(jnp.float32)
    b_head = b_head.astype(jnp.float32)
    eps = eps.astype(jnp.float32)

    # Grid / tile: >=2 steps (when B is non-trivial) so v7x shards the batch
    # across its 2 TensorCores; TB multiple of 16 for bf16 sublane packing and
    # derived from cdiv(B, grid) so the last tile isn't mostly padding.
    min_grid = 2 if B > 16 else 1
    grid_n = max(min_grid, _cdiv(B, tile_b))
    TB = _round_up(_cdiv(B, grid_n), 16)
    B_pad = grid_n * TB
    if B_pad != B:
        obs_bf = jnp.pad(obs_bf, ((0, B_pad - B), (0, 0)))
        eps = jnp.pad(eps, ((0, B_pad - B), (0, 0)))

    def batch_spec(d):
        return pl.BlockSpec((TB, d), lambda i: (i, 0))

    def resident_spec(shape):
        # Constant index_map -> block stays VMEM-resident across the batch grid.
        # TODO(synk): at production HID sizes, add pipeline_mode=pl.Buffered(1)
        # here to skip double-buffering these never-changing blocks.
        return pl.BlockSpec(shape, lambda i: (0, 0))

    in_specs = [
        batch_spec(OBS),                  # obs (tiled over batch)
        batch_spec(A),                    # eps (tiled over batch)
        resident_spec(w1.shape),          # weights / constants: VMEM-resident
        resident_spec(b1.shape),
        resident_spec(w2.shape),
        resident_spec(b2.shape),
        resident_spec(w_head.shape),
        resident_spec(b_head.shape),
        resident_spec(a_loc.shape),
        resident_spec(a_scale.shape),
        resident_spec(log_a_scale.shape),
    ]
    out_specs = pl.BlockSpec((TB, A + 1), lambda i: (i, 0))

    # Advisory cost so XLA schedules/overlaps the small custom call sensibly.
    flops = 2 * B_pad * (OBS * HID + HID * HID + HID * 2 * A)
    transcendentals = B_pad * (2 * HID + 4 * A)
    bytes_accessed = (obs_bf.size * 2 + eps.size * 4 + B_pad * (A + 1) * 4
                      + (w1.size + w2.size + w_head.size) * 2
                      + (b1.size + b2.size + b_head.size + 3 * A) * 4)

    # Explicit VMEM budget: double-buffered I/O tiles + resident weights + f32
    # live intermediates, with 2x headroom. Keeps v5e's 16 MiB scoped default
    # from rejecting large tiles while staying under v7x's 64 MiB physical VMEM.
    dbl_io = 2 * TB * (OBS * 2 + A * 4 + (A + 1) * 4)
    wgt = ((w1.size + w2.size + w_head.size) * 2
           + (b1.size + b2.size + b_head.size + 3 * A) * 4)
    live = TB * (2 * HID + 10 * A) * 4
    vmem_limit = int(min(48 << 20, max(16 << 20, 2 * (dbl_io + wgt + live))))

    out = pl.pallas_call(
        functools.partial(ac_policy_kernel, tanh_bf16=tanh_bf16),
        out_shape=jax.ShapeDtypeStruct((B_pad, A + 1), jnp.float32),
        grid=(grid_n,),
        in_specs=in_specs,
        out_specs=out_specs,
        compiler_params=pltpu.CompilerParams(
            dimension_semantics=("parallel",),
            vmem_limit_bytes=vmem_limit),
        cost_estimate=pl.CostEstimate(
            flops=flops,
            transcendentals=transcendentals,
            bytes_accessed=bytes_accessed),
    )(obs_bf, eps, w1, b1, w2, b2, w_head, b_head, a_loc, a_scale, log_a_scale)

    action = out[:B, :A]
    log_prob = out[:B, A]
    return action, log_prob


def _reference(obs, eps, params, a_lower, a_upper):
    # Pure-f32 reference of the PyTorch forward (tanh-Gaussian rsample path).
    h1 = jnp.tanh(obs @ params["w1"] + params["b1"])
    h2 = jnp.tanh(h1 @ params["w2"] + params["b2"])
    loc = h2 @ params["w_loc"] + params["b_loc"]
    log_std = h2 @ params["w_logstd"] + params["b_logstd"]
    scale = jnp.exp(log_std)
    z = loc + scale * eps
    a_loc = (a_lower + a_upper) / 2.0
    a_scale = a_loc - a_lower
    y = a_loc + a_scale * z
    action = jnp.tanh(y)
    base_lp = -0.5 * eps * eps - log_std - 0.5 * _LOG_2PI
    tanh_ladj = 2.0 * (_LOG_2 - y - jax.nn.softplus(-2.0 * y))
    lp = (base_lp - jnp.log(jnp.abs(a_scale)) - tanh_ladj).sum(axis=1)
    return action, lp


if __name__ == "__main__":
    B, OBS, HID, ACT = 20, 32, 64, 8

    key = jax.random.PRNGKey(0)
    k = jax.random.split(key, 8)

    # Deterministic synthetic parameters (shapes implied by an MLP dist_param_model).
    params = {
        "w1": 0.1 * jax.random.normal(k[0], (OBS, HID), jnp.float32),
        "b1": jnp.zeros((HID,), jnp.float32),
        "w2": 0.1 * jax.random.normal(k[1], (HID, HID), jnp.float32),
        "b2": jnp.zeros((HID,), jnp.float32),
        "w_loc": 0.1 * jax.random.normal(k[2], (HID, ACT), jnp.float32),
        "b_loc": jnp.zeros((ACT,), jnp.float32),
        "w_logstd": 0.1 * jax.random.normal(k[3], (HID, ACT), jnp.float32),
        "b_logstd": -0.5 * jnp.ones((ACT,), jnp.float32),
    }

    # Action bounds -> Affine(loc=(lb+ub)/2, scale=loc-lb), then Tanh (as in __init__).
    a_lower = -2.0 * jnp.ones((ACT,), jnp.float32)
    a_upper = 3.0 * jnp.ones((ACT,), jnp.float32)

    obs = jax.random.normal(k[4], (B, OBS), jnp.float32)
    # Reparameterization noise for Normal.rsample(), passed in for determinism.
    eps = jax.random.normal(k[5], (B, ACT), jnp.float32)

    ref_action, ref_lp = _reference(obs, eps, params, a_lower, a_upper)

    # Default tile (grid auto-balanced to >=2 steps) and a tiny tile that
    # exercises a multi-step grid with batch padding.
    for tb in (2048, 8):
        action, log_prob = ac_policy_forward(obs, eps, params, a_lower, a_upper,
                                             tile_b=tb)
        jax.block_until_ready((action, log_prob))
        assert action.shape == (B, ACT) and log_prob.shape == (B,)
        # bf16 MXU operands / bf16 tanh -> slightly looser tolerance vs. all-f32 ref.
        assert jnp.allclose(action, ref_action, atol=5e-2, rtol=5e-2)
        assert jnp.allclose(log_prob, ref_lp, atol=5e-2, rtol=5e-2)

    # TODO(synk): discrete (Categorical.sample) branch, deterministic branch, and
    # the optimizer/update()/save() logic are host/training-side, not in this kernel.
    print("KERNEL_OK")
</pallas_src>

<mosaic_0001>
module attributes {stable_mosaic.version = 11 : i64} {
  func.func @ac_policy_kernel(%arg0: i32, %arg1: memref<16x32xbf16, #tpu.memory_space<vmem>>, %arg2: memref<16x8xf32, #tpu.memory_space<vmem>>, %arg3: memref<32x64xbf16, #tpu.memory_space<vmem>>, %arg4: memref<1x64xf32, #tpu.memory_space<vmem>>, %arg5: memref<64x64xbf16, #tpu.memory_space<vmem>>, %arg6: memref<1x64xf32, #tpu.memory_space<vmem>>, %arg7: memref<64x16xbf16, #tpu.memory_space<vmem>>, %arg8: memref<1x16xf32, #tpu.memory_space<vmem>>, %arg9: memref<1x8xf32, #tpu.memory_space<vmem>>, %arg10: memref<1x8xf32, #tpu.memory_space<vmem>>, %arg11: memref<1x8xf32, #tpu.memory_space<vmem>>, %arg12: memref<16x9xf32, #tpu.memory_space<vmem>>) attributes {dimension_semantics = [#tpu.dimension_semantics<parallel>], iteration_bounds = array<i64: 2>, scalar_prefetch = 0 : i64, scratch_operands = 0 : i64, tpu.core_type = #tpu.core_type<tc>, window_params = [{transform_indices = @transform_0, window_bounds = array<i64: 16, 32>}, {transform_indices = @transform_1, window_bounds = array<i64: 16, 8>}, {pipeline_mode = #tpu.pipeline_mode<synchronous>, transform_indices = @transform_2, window_bounds = array<i64: 32, 64>}, {pipeline_mode = #tpu.pipeline_mode<synchronous>, transform_indices = @transform_3, window_bounds = array<i64: 1, 64>}, {pipeline_mode = #tpu.pipeline_mode<synchronous>, transform_indices = @transform_4, window_bounds = array<i64: 64, 64>}, {pipeline_mode = #tpu.pipeline_mode<synchronous>, transform_indices = @transform_5, window_bounds = array<i64: 1, 64>}, {pipeline_mode = #tpu.pipeline_mode<synchronous>, transform_indices = @transform_6, window_bounds = array<i64: 64, 16>}, {pipeline_mode = #tpu.pipeline_mode<synchronous>, transform_indices = @transform_7, window_bounds = array<i64: 1, 16>}, {pipeline_mode = #tpu.pipeline_mode<synchronous>, transform_indices = @transform_8, window_bounds = array<i64: 1, 8>}, {pipeline_mode = #tpu.pipeline_mode<synchronous>, transform_indices = @transform_9, window_bounds = array<i64: 1, 8>}, {pipeline_mode = #tpu.pipeline_mode<synchronous>, transform_indices = @transform_10, window_bounds = array<i64: 1, 8>}, {transform_indices = @transform_11, window_bounds = array<i64: 16, 9>}]} {
    %c0 = arith.constant 0 : index
    %c0_0 = arith.constant 0 : index
    %0 = vector.load %arg1[%c0, %c0_0] : memref<16x32xbf16, #tpu.memory_space<vmem>>, vector<16x32xbf16>
    %c0_1 = arith.constant 0 : index
    %c0_2 = arith.constant 0 : index
    %1 = vector.load %arg3[%c0_1, %c0_2] : memref<32x64xbf16, #tpu.memory_space<vmem>>, vector<32x64xbf16>
    %cst = arith.constant dense<0.000000e+00> : vector<16x64xf32>
    %2 = tpu.matmul %0, %1, %cst {dimension_numbers = #tpu.dot_dimension_numbers<[1], [0], [0], [1], [0, 0, 1, 1], [], []>} : vector<16x32xbf16>, vector<32x64xbf16>, vector<16x64xf32> -> vector<16x64xf32>
    %c0_3 = arith.constant 0 : index
    %c0_4 = arith.constant 0 : index
    %3 = vector.load %arg4[%c0_3, %c0_4] : memref<1x64xf32, #tpu.memory_space<vmem>>, vector<1x64xf32>
    %4 = vector.broadcast %3 : vector<1x64xf32> to vector<16x64xf32>
    %5 = arith.addf %2, %4 : vector<16x64xf32>
    %6 = math.tanh %5 : vector<16x64xf32>
    %7 = arith.truncf %6 : vector<16x64xf32> to vector<16x64xbf16>
    %c0_5 = arith.constant 0 : index
    %c0_6 = arith.constant 0 : index
    %8 = vector.load %arg5[%c0_5, %c0_6] : memref<64x64xbf16, #tpu.memory_space<vmem>>, vector<64x64xbf16>
    %cst_7 = arith.constant dense<0.000000e+00> : vector<16x64xf32>
    %9 = tpu.matmul %7, %8, %cst_7 {dimension_numbers = #tpu.dot_dimension_numbers<[1], [0], [0], [1], [0, 0, 1, 1], [], []>} : vector<16x64xbf16>, vector<64x64xbf16>, vector<16x64xf32> -> vector<16x64xf32>
    %c0_8 = arith.constant 0 : index
    %c0_9 = arith.constant 0 : index
    %10 = vector.load %arg6[%c0_8, %c0_9] : memref<1x64xf32, #tpu.memory_space<vmem>>, vector<1x64xf32>
    %11 = vector.broadcast %10 : vector<1x64xf32> to vector<16x64xf32>
    %12 = arith.addf %9, %11 : vector<16x64xf32>
    %13 = math.tanh %12 : vector<16x64xf32>
    %14 = arith.truncf %13 : vector<16x64xf32> to vector<16x64xbf16>
    %c0_10 = arith.constant 0 : index
    %c0_11 = arith.constant 0 : index
    %15 = vector.load %arg7[%c0_10, %c0_11] : memref<64x16xbf16, #tpu.memory_space<vmem>>, vector<64x16xbf16>
    %cst_12 = arith.constant dense<0.000000e+00> : vector<16x16xf32>
    %16 = tpu.matmul %14, %15, %cst_12 {dimension_numbers = #tpu.dot_dimension_numbers<[1], [0], [0], [1], [0, 0, 1, 1], [], []>} : vector<16x64xbf16>, vector<64x16xbf16>, vector<16x16xf32> -> vector<16x16xf32>
    %c0_13 = arith.constant 0 : index
    %c0_14 = arith.constant 0 : index
    %17 = vector.load %arg8[%c0_13, %c0_14] : memref<1x16xf32, #tpu.memory_space<vmem>>, vector<1x16xf32>
    %18 = vector.broadcast %17 : vector<1x16xf32> to vector<16x16xf32>
    %19 = arith.addf %16, %18 : vector<16x16xf32>
    %20 = vector.extract_strided_slice %19 {offsets = [0, 0], sizes = [16, 8], strides = [1, 1]} : vector<16x16xf32> to vector<16x8xf32>
    %21 = vector.extract_strided_slice %19 {offsets = [0, 8], sizes = [16, 8], strides = [1, 1]} : vector<16x16xf32> to vector<16x8xf32>
    %22 = math.exp %21 : vector<16x8xf32>
    %c0_15 = arith.constant 0 : index
    %c0_16 = arith.constant 0 : index
    %23 = vector.load %arg2[%c0_15, %c0_16] : memref<16x8xf32, #tpu.memory_space<vmem>>, vector<16x8xf32>
    %24 = arith.mulf %22, %23 : vector<16x8xf32>
    %25 = arith.addf %20, %24 : vector<16x8xf32>
    %c0_17 = arith.constant 0 : index
    %c0_18 = arith.constant 0 : index
    %26 = vector.load %arg9[%c0_17, %c0_18] : memref<1x8xf32, #tpu.memory_space<vmem>>, vector<1x8xf32>
    %c0_19 = arith.constant 0 : index
    %c0_20 = arith.constant 0 : index
    %27 = vector.load %arg10[%c0_19, %c0_20] : memref<1x8xf32, #tpu.memory_space<vmem>>, vector<1x8xf32>
    %28 = vector.broadcast %27 : vector<1x8xf32> to vector<16x8xf32>
    %29 = arith.mulf %28, %25 : vector<16x8xf32>
    %30 = vector.broadcast %26 : vector<1x8xf32> to vector<16x8xf32>
    %31 = arith.addf %30, %29 : vector<16x8xf32>
    %32 = math.tanh %31 : vector<16x8xf32>
    %cst_21 = arith.constant -5.000000e-01 : f32
    %33 = vector.broadcast %cst_21 : f32 to vector<16x8xf32>
    %34 = arith.mulf %33, %23 : vector<16x8xf32>
    %35 = arith.mulf %34, %23 : vector<16x8xf32>
    %36 = arith.subf %35, %21 : vector<16x8xf32>
    %cst_22 = arith.constant 0.918938517 : f32
    %37 = vector.broadcast %cst_22 : f32 to vector<16x8xf32>
    %38 = arith.subf %36, %37 : vector<16x8xf32>
    %cst_23 = arith.constant 0.693147182 : f32
    %39 = vector.broadcast %cst_23 : f32 to vector<16x8xf32>
    %40 = arith.subf %39, %31 : vector<16x8xf32>
    %cst_24 = arith.constant -2.000000e+00 : f32
    %41 = vector.broadcast %cst_24 : f32 to vector<16x8xf32>
    %42 = arith.mulf %41, %31 : vector<16x8xf32>
    %cst_25 = arith.constant 0.000000e+00 : f32
    %43 = vector.broadcast %cst_25 : f32 to vector<16x8xf32>
    %44 = arith.maximumf %42, %43 : vector<16x8xf32>
    %45 = math.absf %42 : vector<16x8xf32>
    %cst_26 = arith.constant 0.000000e+00 : f32
    %46 = vector.broadcast %cst_26 : f32 to vector<16x8xf32>
    %47 = arith.subf %46, %45 : vector<16x8xf32>
    %48 = math.exp %47 : vector<16x8xf32>
    %49 = math.log1p %48 : vector<16x8xf32>
    %50 = arith.addf %44, %49 : vector<16x8xf32>
    %51 = arith.subf %40, %50 : vector<16x8xf32>
    %cst_27 = arith.constant 2.000000e+00 : f32
    %52 = vector.broadcast %cst_27 : f32 to vector<16x8xf32>
    %53 = arith.mulf %52, %51 : vector<16x8xf32>
    %c0_28 = arith.constant 0 : index
    %c0_29 = arith.constant 0 : index
    %54 = vector.load %arg11[%c0_28, %c0_29] : memref<1x8xf32, #tpu.memory_space<vmem>>, vector<1x8xf32>
    %55 = vector.broadcast %54 : vector<1x8xf32> to vector<16x8xf32>
    %56 = arith.subf %38, %55 : vector<16x8xf32>
    %57 = arith.subf %56, %53 : vector<16x8xf32>
    %cst_30 = arith.constant dense<0.000000e+00> : vector<16xf32>
    %58 = vector.multi_reduction <add>, %57, %cst_30 [1] : vector<16x8xf32> to vector<16xf32>
    %59 = vector.shape_cast %58 : vector<16xf32> to vector<16x1xf32>
    %c0_31 = arith.constant 0 : index
    %c0_32 = arith.constant 0 : index
    %60 = vector.load %arg12[%c0_31, %c0_32] : memref<16x9xf32, #tpu.memory_space<vmem>>, vector<16x8xf32>
    tpu.vector_store %arg12[%c0_31, %c0_32], %32 {strides = array<i32>} : memref<16x9xf32, #tpu.memory_space<vmem>>, vector<16x8xf32>,
    %c0_33 = arith.constant 0 : index
    %c8 = arith.constant 8 : index
    %61 = vector.load %arg12[%c0_33, %c8] : memref<16x9xf32, #tpu.memory_space<vmem>>, vector<16x1xf32>
    tpu.vector_store %arg12[%c0_33, %c8], %59 {strides = array<i32>} : memref<16x9xf32, #tpu.memory_space<vmem>>, vector<16x1xf32>,
    return
  }
  func.func @transform_0(%arg0: i32) -> (i32, i32) {
    %c0_i32 = arith.constant 0 : i32
    %c0_i32_0 = arith.constant 0 : i32
    return %arg0, %c0_i32 : i32, i32
  }
  func.func @transform_1(%arg0: i32) -> (i32, i32) {
    %c0_i32 = arith.constant 0 : i32
    %c0_i32_0 = arith.constant 0 : i32
    return %arg0, %c0_i32 : i32, i32
  }
  func.func @transform_2(%arg0: i32) -> (i32, i32) {
    %c0_i32 = arith.constant 0 : i32
    %c0_i32_0 = arith.constant 0 : i32
    %c0_i32_1 = arith.constant 0 : i32
    return %c0_i32, %c0_i32_0 : i32, i32
  }
  func.func @transform_3(%arg0: i32) -> (i32, i32) {
    %c0_i32 = arith.constant 0 : i32
    %c0_i32_0 = arith.constant 0 : i32
    %c0_i32_1 = arith.constant 0 : i32
    return %c0_i32, %c0_i32_0 : i32, i32
  }
  func.func @transform_4(%arg0: i32) -> (i32, i32) {
    %c0_i32 = arith.constant 0 : i32
    %c0_i32_0 = arith.constant 0 : i32
    %c0_i32_1 = arith.constant 0 : i32
    return %c0_i32, %c0_i32_0 : i32, i32
  }
  func.func @transform_5(%arg0: i32) -> (i32, i32) {
    %c0_i32 = arith.constant 0 : i32
    %c0_i32_0 = arith.constant 0 : i32
    %c0_i32_1 = arith.constant 0 : i32
    return %c0_i32, %c0_i32_0 : i32, i32
  }
  func.func @transform_6(%arg0: i32) -> (i32, i32) {
    %c0_i32 = arith.constant 0 : i32
    %c0_i32_0 = arith.constant 0 : i32
    %c0_i32_1 = arith.constant 0 : i32
    return %c0_i32, %c0_i32_0 : i32, i32
  }
  func.func @transform_7(%arg0: i32) -> (i32, i32) {
    %c0_i32 = arith.constant 0 : i32
    %c0_i32_0 = arith.constant 0 : i32
    %c0_i32_1 = arith.constant 0 : i32
    return %c0_i32, %c0_i32_0 : i32, i32
  }
  func.func @transform_8(%arg0: i32) -> (i32, i32) {
    %c0_i32 = arith.constant 0 : i32
    %c0_i32_0 = arith.constant 0 : i32
    %c0_i32_1 = arith.constant 0 : i32
    return %c0_i32, %c0_i32_0 : i32, i32
  }
  func.func @transform_9(%arg0: i32) -> (i32, i32) {
    %c0_i32 = arith.constant 0 : i32
    %c0_i32_0 = arith.constant 0 : i32
    %c0_i32_1 = arith.constant 0 : i32
    return %c0_i32, %c0_i32_0 : i32, i32
  }
  func.func @transform_10(%arg0: i32) -> (i32, i32) {
    %c0_i32 = arith.constant 0 : i32
    %c0_i32_0 = arith.constant 0 : i32
    %c0_i32_1 = arith.constant 0 : i32
    return %c0_i32, %c0_i32_0 : i32, i32
  }
  func.func @transform_11(%arg0: i32) -> (i32, i32) {
    %c0_i32 = arith.constant 0 : i32
    %c0_i32_0 = arith.constant 0 : i32
    return %arg0, %c0_i32 : i32, i32
  }
}

</mosaic_0001>

<llo_original>
// kernel: tpu_custom_call.1
$region0: #{tpu_custom_call.1}
  #allocation0 [shape = 'u32[]', space=smem, size = 0x4, offset = 0x4, fixed_abs, tag = 'smem constant byte address 0x4 - core index']
  #allocation1 [shape = 'u32[144,128]{1,0:T(1,128)}', space=vmem, size = 0x12000, scoped, tag = 'internal scratch']
  %s0 = inlined_call_operand.vmem [shape: bf16[32,32], index: 0, kind: input, shape index: {}]
  %s1 = inlined_call_operand.vmem [shape: f32[32,8], index: 1, kind: input, shape index: {}]
  %s2 = inlined_call_operand.vmem [shape: bf16[32,64], index: 2, kind: input, shape index: {}]
  %s3 = inlined_call_operand.vmem [shape: f32[1,64], index: 3, kind: input, shape index: {}]
  %s4 = inlined_call_operand.vmem [shape: bf16[64,64], index: 4, kind: input, shape index: {}]
  %s5 = inlined_call_operand.vmem [shape: f32[1,64], index: 5, kind: input, shape index: {}]
  %s6 = inlined_call_operand.vmem [shape: bf16[64,16], index: 6, kind: input, shape index: {}]
  %s7 = inlined_call_operand.vmem [shape: f32[1,16], index: 7, kind: input, shape index: {}]
  %s8 = inlined_call_operand.vmem [shape: f32[1,8], index: 8, kind: input, shape index: {}]
  %s9 = inlined_call_operand.vmem [shape: f32[1,8], index: 9, kind: input, shape index: {}]
  %s10 = inlined_call_operand.vmem [shape: f32[1,8], index: 10, kind: input, shape index: {}]
  %s11 = inlined_call_operand.vmem [shape: f32[32,9], index: 11, kind: output, shape index: {}]
  %s12 = sld [smem:[#allocation0]]
  $region77: #{tpu_custom_call.1} parent=0
    _
  %s14 = ssub.s32 1, %s12
  %s15 = scalar_select 0, %s14, %s12
  loop: start=0, step=1, limit=4
  $region2: #{tpu_custom_call.1} parent=0 // loop_pre_header
    _
  $region3: #{tpu_custom_call.1} parent=0 // loop_header
    %s17 = sphi 0, %s21
    %p18 = scmp.ge.s32.totalorder %s17, 4
    %s27 = sphi 0, %s29
    %s30 = sphi 0, %s27
    %s31 = sphi 0, %s30
    %s47 = sphi 0, %s31
    %s53 = sphi 0, %s55
    %s56 = sphi 0, %s53
    %s57 = sphi 0, %s56
    %s73 = sphi 0, %s57
    %s77 = sphi 0, %s77
    %s79 = sphi 0, %s77
    %s80 = sphi 0, %s79
    %s94 = sphi 0, %s80
    %s98 = sphi 0, %s98
    %s100 = sphi 0, %s98
    %s101 = sphi 0, %s100
    %s115 = sphi 0, %s101
    %s119 = sphi 0, %s119
    %s121 = sphi 0, %s119
    %s122 = sphi 0, %s121
    %s136 = sphi 0, %s122
    %s140 = sphi 0, %s140
    %s142 = sphi 0, %s140
    %s143 = sphi 0, %s142
    %s157 = sphi 0, %s143
    %s161 = sphi 0, %s161
    %s163 = sphi 0, %s161
    %s164 = sphi 0, %s163
    %s178 = sphi 0, %s164
    %s182 = sphi 0, %s182
    %s184 = sphi 0, %s182
    %s185 = sphi 0, %s184
    %s199 = sphi 0, %s185
    %s203 = sphi 0, %s203
    %s205 = sphi 0, %s203
    %s206 = sphi 0, %s205
    %s220 = sphi 0, %s206
    %s224 = sphi 0, %s224
    %s226 = sphi 0, %s224
    %s227 = sphi 0, %s226
    %s241 = sphi 0, %s227
    %s245 = sphi 0, %s245
    %s247 = sphi 0, %s245
    %s248 = sphi 0, %s247
    %s262 = sphi 0, %s248
    %s268 = sphi 0, %s270
    %s271 = sphi 0, %s268
    %s272 = sphi 0, %s271
    %s288 = sphi 0, %s272
  $region4: #{tpu_custom_call.1} parent=0 // loop_header_branch
    %20 = sbr.rel (%p18) target = $region8
  $region5: #{tpu_custom_call.1} parent=0 // loop_body
    %s22 = ssub.s32 %s17, 1
    %s23 = ssub.s32 %s17, 2
    %s24 = sadd.s32 %s17, 1
    %s25 = ssub.s32 %s17, %s24
    %p26 = scmp.eq.s32.totalorder %s25, 0
    %s28 = sadd.s32 %s27, 1
    %s29 = scalar_select %p26, %s27, %s28
    %p32 = pneg %p26
    %p33 = scmp.eq.s32.totalorder %s17, 1
    %p34 = por %p32, %p33
    %p35 = scmp.ne.s32.totalorder %s27, %s30
    %p36 = scmp.eq.s32.totalorder %s17, 0
    %p37 = por %p35, %p36
    %p38 = scmp.ne.s32.totalorder %s27, %s30
    %p39 = scmp.eq.s32.totalorder %s22, 1
    %p40 = por %p38, %p39
    %p41 = scmp.ne.s32.totalorder %s30, %s31
    %p42 = scmp.eq.s32.totalorder %s22, 0
    %p43 = por %p41, %p42
    %p44 = scmp.ne.s32.totalorder %s30, %s31
    %p45 = scmp.eq.s32.totalorder %s23, 1
    %p46 = por %p44, %p45
    %p48 = scmp.ne.s32.totalorder %s31, %s47
    %p49 = scmp.eq.s32.totalorder %s23, 0
    %p50 = por %p48, %p49
    %s51 = ssub.s32 %s17, %s24
    %p52 = scmp.eq.s32.totalorder %s51, 0
    %s54 = sadd.s32 %s53, 1
    %s55 = scalar_select %p52, %s53, %s54
    %p58 = pneg %p52
    %p59 = scmp.eq.s32.totalorder %s17, 1
    %p60 = por %p58, %p59
    %p61 = scmp.ne.s32.totalorder %s53, %s56
    %p62 = scmp.eq.s32.totalorder %s17, 0
    %p63 = por %p61, %p62
    %p64 = scmp.ne.s32.totalorder %s53, %s56
    %p65 = scmp.eq.s32.totalorder %s22, 1
    %p66 = por %p64, %p65
    %p67 = scmp.ne.s32.totalorder %s56, %s57
    %p68 = scmp.eq.s32.totalorder %s22, 0
    %p69 = por %p67, %p68
    %p70 = scmp.ne.s32.totalorder %s56, %s57
    %p71 = scmp.eq.s32.totalorder %s23, 1
    %p72 = por %p70, %p71
    %p74 = scmp.ne.s32.totalorder %s57, %s73
    %p75 = scmp.eq.s32.totalorder %s23, 0
    %p76 = por %p74, %p75
    %s78 = sadd.s32 %s77, 1
    %p81 = scmp.eq.s32.totalorder %s17, 1
    %p82 = scmp.ne.s32.totalorder %s77, %s79
    %p83 = scmp.eq.s32.totalorder %s17, 0
    %p84 = por %p82, %p83
    %p85 = scmp.ne.s32.totalorder %s77, %s79
    %p86 = scmp.eq.s32.totalorder %s22, 1
    %p87 = por %p85, %p86
    %p88 = scmp.ne.s32.totalorder %s79, %s80
    %p89 = scmp.eq.s32.totalorder %s22, 0
    %p90 = por %p88, %p89
    %p91 = scmp.ne.s32.totalorder %s79, %s80
    %p92 = scmp.eq.s32.totalorder %s23, 1
    %p93 = por %p91, %p92
    %p95 = scmp.ne.s32.totalorder %s80, %s94
    %p96 = scmp.eq.s32.totalorder %s23, 0
    %p97 = por %p95, %p96
    %s99 = sadd.s32 %s98, 1
    %p102 = scmp.eq.s32.totalorder %s17, 1
    %p103 = scmp.ne.s32.totalorder %s98, %s100
    %p104 = scmp.eq.s32.totalorder %s17, 0
    %p105 = por %p103, %p104
    %p106 = scmp.ne.s32.totalorder %s98, %s100
    %p107 = scmp.eq.s32.totalorder %s22, 1
    %p108 = por %p106, %p107
    %p109 = scmp.ne.s32.totalorder %s100, %s101
    %p110 = scmp.eq.s32.totalorder %s22, 0
    %p111 = por %p109, %p110
    %p112 = scmp.ne.s32.totalorder %s100, %s101
    %p113 = scmp.eq.s32.totalorder %s23, 1
    %p114 = por %p112, %p113
    %p116 = scmp.ne.s32.totalorder %s101, %s115
    %p117 = scmp.eq.s32.totalorder %s23, 0
    %p118 = por %p116, %p117
    %s120 = sadd.s32 %s119, 1
    %p123 = scmp.eq.s32.totalorder %s17, 1
    %p124 = scmp.ne.s32.totalorder %s119, %s121
    %p125 = scmp.eq.s32.totalorder %s17, 0
    %p126 = por %p124, %p125
    %p127 = scmp.ne.s32.totalorder %s119, %s121
    %p128 = scmp.eq.s32.totalorder %s22, 1
    %p129 = por %p127, %p128
    %p130 = scmp.ne.s32.totalorder %s121, %s122
    %p131 = scmp.eq.s32.totalorder %s22, 0
    %p132 = por %p130, %p131
    %p133 = scmp.ne.s32.totalorder %s121, %s122
    %p134 = scmp.eq.s32.totalorder %s23, 1
    %p135 = por %p133, %p134
    %p137 = scmp.ne.s32.totalorder %s122, %s136
    %p138 = scmp.eq.s32.totalorder %s23, 0
    %p139 = por %p137, %p138
    %s141 = sadd.s32 %s140, 1
    %p144 = scmp.eq.s32.totalorder %s17, 1
    %p145 = scmp.ne.s32.totalorder %s140, %s142
    %p146 = scmp.eq.s32.totalorder %s17, 0
    %p147 = por %p145, %p146
    %p148 = scmp.ne.s32.totalorder %s140, %s142
    %p149 = scmp.eq.s32.totalorder %s22, 1
    %p150 = por %p148, %p149
    %p151 = scmp.ne.s32.totalorder %s142, %s143
    %p152 = scmp.eq.s32.totalorder %s22, 0
    %p153 = por %p151, %p152
    %p154 = scmp.ne.s32.totalorder %s142, %s143
    %p155 = scmp.eq.s32.totalorder %s23, 1
    %p156 = por %p154, %p155
    %p158 = scmp.ne.s32.totalorder %s143, %s157
    %p159 = scmp.eq.s32.totalorder %s23, 0
    %p160 = por %p158, %p159
    %s162 = sadd.s32 %s161, 1
    %p165 = scmp.eq.s32.totalorder %s17, 1
    %p166 = scmp.ne.s32.totalorder %s161, %s163
    %p167 = scmp.eq.s32.totalorder %s17, 0
    %p168 = por %p166, %p167
    %p169 = scmp.ne.s32.totalorder %s161, %s163
    %p170 = scmp.eq.s32.totalorder %s22, 1
    %p171 = por %p169, %p170
    %p172 = scmp.ne.s32.totalorder %s163, %s164
    %p173 = scmp.eq.s32.totalorder %s22, 0
    %p174 = por %p172, %p173
    %p175 = scmp.ne.s32.totalorder %s163, %s164
    %p176 = scmp.eq.s32.totalorder %s23, 1
    %p177 = por %p175, %p176
    %p179 = scmp.ne.s32.totalorder %s164, %s178
    %p180 = scmp.eq.s32.totalorder %s23, 0
    %p181 = por %p179, %p180
    %s183 = sadd.s32 %s182, 1
    %p186 = scmp.eq.s32.totalorder %s17, 1
    %p187 = scmp.ne.s32.totalorder %s182, %s184
    %p188 = scmp.eq.s32.totalorder %s17, 0
    %p189 = por %p187, %p188
    %p190 = scmp.ne.s32.totalorder %s182, %s184
    %p191 = scmp.eq.s32.totalorder %s22, 1
    %p192 = por %p190, %p191
    %p193 = scmp.ne.s32.totalorder %s184, %s185
    %p194 = scmp.eq.s32.totalorder %s22, 0
    %p195 = por %p193, %p194
    %p196 = scmp.ne.s32.totalorder %s184, %s185
    %p197 = scmp.eq.s32.totalorder %s23, 1
    %p198 = por %p196, %p197
    %p200 = scmp.ne.s32.totalorder %s185, %s199
    %p201 = scmp.eq.s32.totalorder %s23, 0
    %p202 = por %p200, %p201
    %s204 = sadd.s32 %s203, 1
    %p207 = scmp.eq.s32.totalorder %s17, 1
    %p208 = scmp.ne.s32.totalorder %s203, %s205
    %p209 = scmp.eq.s32.totalorder %s17, 0
    %p210 = por %p208, %p209
    %p211 = scmp.ne.s32.totalorder %s203, %s205
    %p212 = scmp.eq.s32.totalorder %s22, 1
    %p213 = por %p211, %p212
    %p214 = scmp.ne.s32.totalorder %s205, %s206
    %p215 = scmp.eq.s32.totalorder %s22, 0
    %p216 = por %p214, %p215
    %p217 = scmp.ne.s32.totalorder %s205, %s206
    %p218 = scmp.eq.s32.totalorder %s23, 1
    %p219 = por %p217, %p218
    %p221 = scmp.ne.s32.totalorder %s206, %s220
    %p222 = scmp.eq.s32.totalorder %s23, 0
    %p223 = por %p221, %p222
    %s225 = sadd.s32 %s224, 1
    %p228 = scmp.eq.s32.totalorder %s17, 1
    %p229 = scmp.ne.s32.totalorder %s224, %s226
    %p230 = scmp.eq.s32.totalorder %s17, 0
    %p231 = por %p229, %p230
    %p232 = scmp.ne.s32.totalorder %s224, %s226
    %p233 = scmp.eq.s32.totalorder %s22, 1
    %p234 = por %p232, %p233
    %p235 = scmp.ne.s32.totalorder %s226, %s227
    %p236 = scmp.eq.s32.totalorder %s22, 0
    %p237 = por %p235, %p236
    %p238 = scmp.ne.s32.totalorder %s226, %s227
    %p239 = scmp.eq.s32.totalorder %s23, 1
    %p240 = por %p238, %p239
    %p242 = scmp.ne.s32.totalorder %s227, %s241
    %p243 = scmp.eq.s32.totalorder %s23, 0
    %p244 = por %p242, %p243
    %s246 = sadd.s32 %s245, 1
    %p249 = scmp.eq.s32.totalorder %s17, 1
    %p250 = scmp.ne.s32.totalorder %s245, %s247
    %p251 = scmp.eq.s32.totalorder %s17, 0
    %p252 = por %p250, %p251
    %p253 = scmp.ne.s32.totalorder %s245, %s247
    %p254 = scmp.eq.s32.totalorder %s22, 1
    %p255 = por %p253, %p254
    %p256 = scmp.ne.s32.totalorder %s247, %s248
    %p257 = scmp.eq.s32.totalorder %s22, 0
    %p258 = por %p256, %p257
    %p259 = scmp.ne.s32.totalorder %s247, %s248
    %p260 = scmp.eq.s32.totalorder %s23, 1
    %p261 = por %p259, %p260
    %p263 = scmp.ne.s32.totalorder %s248, %s262
    %p264 = scmp.eq.s32.totalorder %s23, 0
    %p265 = por %p263, %p264
    %s266 = ssub.s32 %s17, %s24
    %p267 = scmp.eq.s32.totalorder %s266, 0
    %s269 = sadd.s32 %s268, 1
    %s270 = scalar_select %p267, %s268, %s269
    %p273 = pneg %p267
    %p274 = scmp.eq.s32.totalorder %s17, 1
    %p275 = por %p273, %p274
    %p276 = scmp.ne.s32.totalorder %s268, %s271
    %p277 = scmp.eq.s32.totalorder %s17, 0
    %p278 = por %p276, %p277
    %p279 = scmp.ne.s32.totalorder %s268, %s271
    %p280 = scmp.eq.s32.totalorder %s22, 1
    %p281 = por %p279, %p280
    %p282 = scmp.ne.s32.totalorder %s271, %s272
    %p283 = scmp.eq.s32.totalorder %s22, 0
    %p284 = por %p282, %p283
    %p285 = scmp.ne.s32.totalorder %s271, %s272
    %p286 = scmp.eq.s32.totalorder %s23, 1
    %p287 = por %p285, %p286
    %p289 = scmp.ne.s32.totalorder %s272, %s288
    %p290 = scmp.eq.s32.totalorder %s23, 0
    %p291 = por %p289, %p290
    %p292 = scmp.le.s32.totalorder 1, %s17
    %p293 = scmp.lt.s32.totalorder %s17, 3
    %p294 = pnand %p292, %p293
    %p295 = pneg %p294
    // Predicated region
    $region9: #{tpu_custom_call.1} parent=5 // pred_check
      _
    $region10: #{tpu_custom_call.1} parent=5 // pred_check_branch
      %297 = sbr.rel (%p294) target = $region12
    $region11: #{tpu_custom_call.1} parent=5 // pred_region
      %s298 = ssub.s32 %s17, 1
      // Predicated region
      $region13: #{tpu_custom_call.1} parent=11 // pred_check
        %p299 = pneg %p90
      $region14: #{tpu_custom_call.1} parent=11 // pred_check_branch
        %301 = sbr.rel (%p299) target = $region16
      $region15: #{tpu_custom_call.1} parent=11 // pred_region
        _
      $region16: #{tpu_custom_call.1} parent=11 // pred_fallthru
        _
      // Predicated region
      $region17: #{tpu_custom_call.1} parent=11 // pred_check
        %p302 = pneg %p111
      $region18: #{tpu_custom_call.1} parent=11 // pred_check_branch
        %304 = sbr.rel (%p302) target = $region20
      $region19: #{tpu_custom_call.1} parent=11 // pred_region
        _
      $region20: #{tpu_custom_call.1} parent=11 // pred_fallthru
        _
      // Predicated region
      $region21: #{tpu_custom_call.1} parent=11 // pred_check
        %p305 = pneg %p132
      $region22: #{tpu_custom_call.1} parent=11 // pred_check_branch
        %307 = sbr.rel (%p305) target = $region24
      $region23: #{tpu_custom_call.1} parent=11 // pred_region
        _
      $region24: #{tpu_custom_call.1} parent=11 // pred_fallthru
        _
      // Predicated region
      $region25: #{tpu_custom_call.1} parent=11 // pred_check
        %p308 = pneg %p153
      $region26: #{tpu_custom_call.1} parent=11 // pred_check_branch
        %310 = sbr.rel (%p308) target = $region28
      $region27: #{tpu_custom_call.1} parent=11 // pred_region
        _
      $region28: #{tpu_custom_call.1} parent=11 // pred_fallthru
        _
      // Predicated region
      $region29: #{tpu_custom_call.1} parent=11 // pred_check
        %p311 = pneg %p174
      $region30: #{tpu_custom_call.1} parent=11 // pred_check_branch
        %313 = sbr.rel (%p311) target = $region32
      $region31: #{tpu_custom_call.1} parent=11 // pred_region
        _
      $region32: #{tpu_custom_call.1} parent=11 // pred_fallthru
        _
      // Predicated region
      $region33: #{tpu_custom_call.1} parent=11 // pred_check
        %p314 = pneg %p195
      $region34: #{tpu_custom_call.1} parent=11 // pred_check_branch
        %316 = sbr.rel (%p314) target = $region36
      $region35: #{tpu_custom_call.1} parent=11 // pred_region
        _
      $region36: #{tpu_custom_call.1} parent=11 // pred_fallthru
        _
      // Predicated region
      $region37: #{tpu_custom_call.1} parent=11 // pred_check
        %p317 = pneg %p216
      $region38: #{tpu_custom_call.1} parent=11 // pred_check_branch
        %319 = sbr.rel (%p317) target = $region40
      $region39: #{tpu_custom_call.1} parent=11 // pred_region
        _
      $region40: #{tpu_custom_call.1} parent=11 // pred_fallthru
        _
      // Predicated region
      $region41: #{tpu_custom_call.1} parent=11 // pred_check
        %p320 = pneg %p237
      $region42: #{tpu_custom_call.1} parent=11 // pred_check_branch
        %322 = sbr.rel (%p320) target = $region44
      $region43: #{tpu_custom_call.1} parent=11 // pred_region
        _
      $region44: #{tpu_custom_call.1} parent=11 // pred_fallthru
        _
      // Predicated region
      $region45: #{tpu_custom_call.1} parent=11 // pred_check
        %p323 = pneg %p258
      $region46: #{tpu_custom_call.1} parent=11 // pred_check_branch
        %325 = sbr.rel (%p323) target = $region48
      $region47: #{tpu_custom_call.1} parent=11 // pred_region
        _
      $region48: #{tpu_custom_call.1} parent=11 // pred_fallthru
        _
    $region12: #{tpu_custom_call.1} parent=5 // pred_fallthru
      _
    %p326 = scmp.lt.s32.totalorder %s17, 2
    // Predicated region
    $region49: #{tpu_custom_call.1} parent=5 // pred_check
      %p327 = pneg %p326
    $region50: #{tpu_custom_call.1} parent=5 // pred_check_branch
      %329 = sbr.rel (%p327) target = $region52
    $region51: #{tpu_custom_call.1} parent=5 // pred_region
      // Predicated region
      $region53: #{tpu_custom_call.1} parent=51 // pred_check
        %p330 = pneg %p37
      $region54: #{tpu_custom_call.1} parent=51 // pred_check_branch
        %332 = sbr.rel (%p330) target = $region56
      $region55: #{tpu_custom_call.1} parent=51 // pred_region
        %s333 = smul.u32 2, %s17
        %p334 = scmp.lt.s32.totalorder %s333, 3
        %s335 = scalar_select %p334, %s333, 3
        %s336 = smul.addr %s335, 4
        %s337 = scalar_lea.vmem %s0, %s336
        %s338 = smul.u32 2, %s17
      $region56: #{tpu_custom_call.1} parent=51 // pred_fallthru
        _
      // Predicated region
      $region57: #{tpu_custom_call.1} parent=51 // pred_check
        %p339 = pneg %p63
      $region58: #{tpu_custom_call.1} parent=51 // pred_check_branch
        %341 = sbr.rel (%p339) target = $region60
      $region59: #{tpu_custom_call.1} parent=51 // pred_region
        %s342 = smul.u32 2, %s17
        %p343 = scmp.lt.s32.totalorder %s342, 3
        %s344 = scalar_select %p343, %s342, 3
        %s345 = smul.addr %s344, 8
        %s346 = scalar_lea.vmem %s1, %s345
        %s347 = smul.u32 2, %s17
      $region60: #{tpu_custom_call.1} parent=51 // pred_fallthru
        _
    $region52: #{tpu_custom_call.1} parent=5 // pred_fallthru
      _
    %p348 = scmp.le.s32.totalorder 1, %s17
    %p349 = scmp.lt.s32.totalorder %s17, 3
    %p350 = pnand %p348, %p349
    %p351 = pneg %p350
    // Predicated region
    $region61: #{tpu_custom_call.1} parent=5 // pred_check
      _
    $region62: #{tpu_custom_call.1} parent=5 // pred_check_branch
      %353 = sbr.rel (%p350) target = $region64
    $region63: #{tpu_custom_call.1} parent=5 // pred_region
      %s354 = ssub.s32 %s17, 1
      %s355 = smul.u32 2, %s22
      %p356 = scmp.lt.s32.totalorder %s355, 3
      %s357 = scalar_select %p356, %s355, 3
      %s358 = smul.addr %s357, 4
      %s359 = scalar_lea.vmem %s0, %s358
      %p360 = pneg %p43
      %p361 = pneg %p40
      %s362 = smul.u32 2, %s22
      %p363 = scmp.lt.s32.totalorder %s362, 3
      %s364 = scalar_select %p363, %s362, 3
      %s365 = smul.addr %s364, 8
      %s366 = scalar_lea.vmem %s1, %s365
      %p367 = pneg %p69
      %p368 = pneg %p66
      %p369 = pneg %p90
      %p370 = pneg %p87
      %p371 = pneg %p111
      %p372 = pneg %p108
      %p373 = pneg %p132
      %p374 = pneg %p129
      %p375 = pneg %p153
      %p376 = pneg %p150
      %p377 = pneg %p174
      %p378 = pneg %p171
      %p379 = pneg %p195
      %p380 = pneg %p192
      %p381 = pneg %p216
      %p382 = pneg %p213
      %p383 = pneg %p237
      %p384 = pneg %p234
      %p385 = pneg %p258
      %p386 = pneg %p255
      %p387 = pneg %p284
      %p388 = pneg %p281
      %s389 = smul.u32 2, %s22
      %p390 = scmp.lt.s32.totalorder %s389, 3
      %s391 = scalar_select %p390, %s389, 3
      %s392 = smul.addr %s391, 8
      %s393 = scalar_lea.vmem %s11, %s392
      %s394 = smul.u32 2, %s22
      %p395 = scmp.lt.s32.totalorder %s394, 3
      %s396 = scalar_select %p395, %s394, 3
      %s397 = smul.addr %s396, 4
      %s398 = scalar_lea.vmem %s0, %s397
      %s399 = smul.u32 2, %s22
      %s400 = smul.u32 2, %s22
      %p401 = scmp.lt.s32.totalorder %s400, 3
      %s402 = scalar_select %p401, %s400, 3
      %s403 = smul.addr %s402, 8
      %s404 = scalar_lea.vmem %s1, %s403
      %s405 = smul.u32 2, %s22
      %s406 = smul.u32 2, %s22
      %p407 = scmp.lt.s32.totalorder %s406, 3
      %s408 = scalar_select %p407, %s406, 3
      %s409 = smul.addr %s408, 8
      %s410 = scalar_lea.vmem %s11, %s409
      %s411 = smul.u32 2, %s22
      %v413 = vld [vmem:[%s398] sm:$0xf]
      %v414 = vld [vmem:[%s398 + $0x4] sm:$0xf]
      %v415 = vld [vmem:[%s2] sm:$0xf]
      %v416 = vld [vmem:[%s2 + $0x4] sm:$0xf]
      %v417 = vld [vmem:[%s2 + $0x8] sm:$0xf]
      %v418 = vld [vmem:[%s2 + $0xc] sm:$0xf]
      %v419 = vld [vmem:[%s3] sm:$0x1]
      %v421 = vlaneseq
      %v422 = vshrl.u32 %v421, 7
      %v423 = vsub.s32 0, %v422
      %v424 = vrot.slane %v419, %v423
      %v428 = vunpack.c.l.b16 %v413
      %v429 = vunpack.c.l.b16 %v414
      %v430 = vpack.c.b16 %v429, %v428
      %v435 = vunpack.c.l.b16 %v415
      %v436 = vunpack.c.l.b16 %v416
      %v437 = vunpack.c.l.b16 %v417
      %v438 = vunpack.c.l.b16 %v418
      %v439 = vpack.c.b16 %v436, %v435
      %v440 = vpack.c.b16 %v438, %v437
      %vm443 = vcmask 261120
      %v445 = vsel %vm443, %v430, 0
      %447 = vmatprep.subr.bf16.mxu0 0
      %448 = vmatpush1.bf16.msra.mxu0 0
      %449 = vmatprep.subr.bf16.mxu0 0
      %450 = vmatpush1.bf16.msra.mxu0 0
      %451 = vmatprep.subr.bf16.mxu0 0
      %452 = vmatpush1.bf16.msra.mxu0 0
      %453 = vmatprep.subr.bf16.mxu0 0
      %454 = vmatpush1.bf16.msra.mxu0 0
      %455 = vmatprep.subr.bf16.mxu0 0
      %456 = vmatpush1.bf16.msra.mxu0 0
      %457 = vmatprep.subr.bf16.mxu0 0
      %458 = vmatpush1.bf16.msra.mxu0 0
      %459 = vmatprep.subr.bf16.mxu0 0
      %460 = vmatpush1.bf16.msra.mxu0 %v440
      %461 = vmatprep.subr.bf16.mxu0 0
      %462 = vmatpush1.bf16.msra.mxu0 %v439
      %463 = vmatprep.subr.bf16.mxu0 0
      %464 = vmatpush2.bf16.msra.mxu0 0
      %465 = vmatprep.subr.bf16.mxu0 0
      %466 = vmatpush2.bf16.msra.mxu0 0
      %467 = vmatprep.subr.bf16.mxu0 0
      %468 = vmatpush2.bf16.msra.mxu0 0
      %469 = vmatprep.subr.bf16.mxu0 0
      %470 = vmatpush2.bf16.msra.mxu0 0
      %471 = vmatprep.subr.bf16.mxu0 0
      %472 = vmatpush2.bf16.msra.mxu0 0
      %473 = vmatprep.subr.bf16.mxu0 0
      %474 = vmatpush2.bf16.msra.mxu0 0
      %475 = vmatprep.subr.bf16.mxu0 0
      %476 = vmatpush2.bf16.msra.mxu0 0
      %477 = vmatprep.subr.bf16.mxu0 0
      %478 = vmatpush2.bf16.msra.mxu0 0
      %479 = vmatprep.mubr.bf16.mxu0 0
      %480 = vmatmul.mubr.bf16.gmra.mxu0 %v445
      %v481 = vpop.f32.mrf.mxu0
      %v482 = vadd.f32 %v424, %v481
      %v483 = vpop.f32.mrf.mxu0
      %v484 = vpop.f32.mrf.mxu0
      %v485 = vadd.f32 %v424, %v484
      %v486 = vpop.f32.mrf.mxu0
      %487 = vdwg.mxu0
      %v488 = vtanh.pop %v482
      %v489 = vtanh.pop %v485
      %v490 = vpack.c.bf16 %v489, %v488
      %v491 = vld [vmem:[%s4] sm:$0xf]
      %v492 = vld [vmem:[%s4 + $0x4] sm:$0xf]
      %v493 = vld [vmem:[%s4 + $0x8] sm:$0xf]
      %v494 = vld [vmem:[%s4 + $0xc] sm:$0xf]
      %v495 = vld [vmem:[%s4 + $0x10] sm:$0xf]
      %v496 = vld [vmem:[%s4 + $0x14] sm:$0xf]
      %v497 = vld [vmem:[%s4 + $0x18] sm:$0xf]
      %v498 = vld [vmem:[%s4 + $0x1c] sm:$0xf]
      %v499 = vld [vmem:[%s5] sm:$0x1]
      %v501 = vlaneseq
      %v502 = vshrl.u32 %v501, 7
      %v503 = vsub.s32 0, %v502
      %v504 = vrot.slane %v499, %v503
      %v514 = vunpack.c.l.b16 %v491
      %v515 = vunpack.c.l.b16 %v492
      %v516 = vunpack.c.l.b16 %v493
      %v517 = vunpack.c.l.b16 %v494
      %v518 = vunpack.c.l.b16 %v495
      %v519 = vunpack.c.l.b16 %v496
      %v520 = vunpack.c.l.b16 %v497
      %v521 = vunpack.c.l.b16 %v498
      %v522 = vpack.c.b16 %v515, %v514
      %v523 = vpack.c.b16 %v517, %v516
      %v524 = vpack.c.b16 %v519, %v518
      %v525 = vpack.c.b16 %v521, %v520
      %vm530 = vcmask 523264
      %v532 = vsel %vm530, %v490, 0
      %534 = vmatprep.subr.bf16.mxu0 0
      %535 = vmatpush1.bf16.msra.mxu0 0
      %536 = vmatprep.subr.bf16.mxu0 0
      %537 = vmatpush1.bf16.msra.mxu0 0
      %538 = vmatprep.subr.bf16.mxu0 0
      %539 = vmatpush1.bf16.msra.mxu0 0
      %540 = vmatprep.subr.bf16.mxu0 0
      %541 = vmatpush1.bf16.msra.mxu0 0
      %542 = vmatprep.subr.bf16.mxu0 0
      %543 = vmatpush1.bf16.msra.mxu0 %v525
      %544 = vmatprep.subr.bf16.mxu0 0
      %545 = vmatpush1.bf16.msra.mxu0 %v524
      %546 = vmatprep.subr.bf16.mxu0 0
      %547 = vmatpush1.bf16.msra.mxu0 %v523
      %548 = vmatprep.subr.bf16.mxu0 0
      %549 = vmatpush1.bf16.msra.mxu0 %v522
      %550 = vmatprep.subr.bf16.mxu0 0
      %551 = vmatpush2.bf16.msra.mxu0 0
      %552 = vmatprep.subr.bf16.mxu0 0
      %553 = vmatpush2.bf16.msra.mxu0 0
      %554 = vmatprep.subr.bf16.mxu0 0
      %555 = vmatpush2.bf16.msra.mxu0 0
      %556 = vmatprep.subr.bf16.mxu0 0
      %557 = vmatpush2.bf16.msra.mxu0 0
      %558 = vmatprep.subr.bf16.mxu0 0
      %559 = vmatpush2.bf16.msra.mxu0 0
      %560 = vmatprep.subr.bf16.mxu0 0
      %561 = vmatpush2.bf16.msra.mxu0 0
      %562 = vmatprep.subr.bf16.mxu0 0
      %563 = vmatpush2.bf16.msra.mxu0 0
      %564 = vmatprep.subr.bf16.mxu0 0
      %565 = vmatpush2.bf16.msra.mxu0 0
      %566 = vmatprep.mubr.bf16.mxu0 0
      %567 = vmatmul.mubr.bf16.gmra.mxu0 %v532
      %v568 = vpop.f32.mrf.mxu0
      %v569 = vadd.f32 %v504, %v568
      %v570 = vpop.f32.mrf.mxu0
      %v571 = vpop.f32.mrf.mxu0
      %v572 = vadd.f32 %v504, %v571
      %v573 = vpop.f32.mrf.mxu0
      %574 = vdwg.mxu0
      %v575 = vtanh.pop %v569
      %v576 = vtanh.pop %v572
      %v577 = vpack.c.bf16 %v576, %v575
      %v578 = vld [vmem:[%s6] sm:$0xf]
      %v579 = vld [vmem:[%s6 + $0x4] sm:$0xf]
      %v580 = vld [vmem:[%s6 + $0x8] sm:$0xf]
      %v581 = vld [vmem:[%s6 + $0xc] sm:$0xf]
      %v582 = vld [vmem:[%s6 + $0x10] sm:$0xf]
      %v583 = vld [vmem:[%s6 + $0x14] sm:$0xf]
      %v584 = vld [vmem:[%s6 + $0x18] sm:$0xf]
      %v585 = vld [vmem:[%s6 + $0x1c] sm:$0xf]
      %v586 = vld [vmem:[%s7] sm:$0x1]
      %v588 = vlaneseq
      %v589 = vshrl.u32 %v588, 7
      %v590 = vsub.s32 0, %v589
      %v591 = vrot.slane %v586, %v590
      %v601 = vunpack.c.l.b16 %v578
      %v602 = vunpack.c.l.b16 %v579
      %v603 = vunpack.c.l.b16 %v580
      %v604 = vunpack.c.l.b16 %v581
      %v605 = vunpack.c.l.b16 %v582
      %v606 = vunpack.c.l.b16 %v583
      %v607 = vunpack.c.l.b16 %v584
      %v608 = vunpack.c.l.b16 %v585
      %v609 = vpack.c.b16 %v602, %v601
      %v610 = vpack.c.b16 %v604, %v603
      %v611 = vpack.c.b16 %v606, %v605
      %v612 = vpack.c.b16 %v608, %v607
      %v618 = vsel %vm530, %v577, 0
      %620 = vmatprep.subr.bf16.mxu0 0
      %621 = vmatpush1.bf16.msra.mxu0 0
      %622 = vmatprep.subr.bf16.mxu0 0
      %623 = vmatpush1.bf16.msra.mxu0 0
      %624 = vmatprep.subr.bf16.mxu0 0
      %625 = vmatpush1.bf16.msra.mxu0 0
      %626 = vmatprep.subr.bf16.mxu0 0
      %627 = vmatpush1.bf16.msra.mxu0 0
      %628 = vmatprep.subr.bf16.mxu0 0
      %629 = vmatpush1.bf16.msra.mxu0 %v612
      %630 = vmatprep.subr.bf16.mxu0 0
      %631 = vmatpush1.bf16.msra.mxu0 %v611
      %632 = vmatprep.subr.bf16.mxu0 0
      %633 = vmatpush1.bf16.msra.mxu0 %v610
      %634 = vmatprep.subr.bf16.mxu0 0
      %635 = vmatpush1.bf16.msra.mxu0 %v609
      %636 = vmatprep.subr.bf16.mxu0 0
      %637 = vmatpush2.bf16.msra.mxu0 0
      %638 = vmatprep.subr.bf16.mxu0 0
      %639 = vmatpush2.bf16.msra.mxu0 0
      %640 = vmatprep.subr.bf16.mxu0 0
      %641 = vmatpush2.bf16.msra.mxu0 0
      %642 = vmatprep.subr.bf16.mxu0 0
      %643 = vmatpush2.bf16.msra.mxu0 0
      %644 = vmatprep.subr.bf16.mxu0 0
      %645 = vmatpush2.bf16.msra.mxu0 0
      %646 = vmatprep.subr.bf16.mxu0 0
      %647 = vmatpush2.bf16.msra.mxu0 0
      %648 = vmatprep.subr.bf16.mxu0 0
      %649 = vmatpush2.bf16.msra.mxu0 0
      %650 = vmatprep.subr.bf16.mxu0 0
      %651 = vmatpush2.bf16.msra.mxu0 0
      %652 = vmatprep.mubr.bf16.mxu0 0
      %653 = vmatmul.mubr.bf16.gmra.mxu0 %v618
      %v654 = vpop.f32.mrf.mxu0
      %v655 = vadd.f32 %v591, %v654
      %v656 = vpop.f32.mrf.mxu0
      %v657 = vpop.f32.mrf.mxu0
      %v658 = vadd.f32 %v591, %v657
      %v659 = vpop.f32.mrf.mxu0
      %660 = vdwg.mxu0
      %v661 = vmul.f32 %v655, 1.442695
      %v662 = vpow.pop %v661
      %v663 = vmul.f32 %v658, 1.442695
      %v664 = vpow.pop %v663
      %v665 = vld [vmem:[%s404] sm:$0xff]
      %v666 = vld [vmem:[%s404 + $0x8] sm:$0xff]
      %669 = vrot.lane.b32.xlu0 %v665, 8
      %v670 = vpop.permute.xlu0 %669
      %671 = vrot.lane.b32.xlu0 %v666, 8
      %v672 = vpop.permute.xlu0 %671
      %v675 = vmul.f32 %v662, %v670
      %v676 = vmul.f32 %v664, %v672
      %679 = vrot.lane.b32.xlu0 %v675, 120
      %v680 = vpop.permute.xlu0 %679
      %681 = vrot.lane.b32.xlu0 %v676, 120
      %v682 = vpop.permute.xlu0 %681
      %v685 = vadd.f32 %v655, %v680
      %v686 = vadd.f32 %v658, %v682
      %v687 = vld [vmem:[%s8] sm:$0x1]
      %v688 = vld [vmem:[%s9] sm:$0x1]
      %v690 = vlaneseq
      %v691 = vshrl.u32 %v690, 7
      %v692 = vsub.s32 0, %v691
      %v693 = vrot.slane %v688, %v692
      %v695 = vmul.f32 %v693, %v685
      %v696 = vmul.f32 %v693, %v686
      %v698 = vlaneseq
      %v699 = vshrl.u32 %v698, 7
      %v700 = vsub.s32 0, %v699
      %v701 = vrot.slane %v687, %v700
      %v703 = vadd.f32 %v701, %v695
      %v704 = vadd.f32 %v701, %v696
      %v705 = vtanh.pop %v703
      %v706 = vtanh.pop %v704
      %v707 = vmul.f32 %v665, -0.5
      %v708 = vmul.f32 %v666, -0.5
      %v709 = vmul.f32 %v707, %v665
      %v710 = vmul.f32 %v708, %v666
      %713 = vrot.lane.b32.xlu0 %v655, 120
      %v714 = vpop.permute.xlu0 %713
      %715 = vrot.lane.b32.xlu0 %v658, 120
      %v716 = vpop.permute.xlu0 %715
      %v719 = vsub.f32 %v709, %v714
      %v720 = vsub.f32 %v710, %v716
      %v721 = vsub.f32 %v719, 0.9189385
      %v722 = vsub.f32 %v720, 0.9189385
      %v723 = vsub.f32 0.6931472, %v703
      %v724 = vsub.f32 0.6931472, %v704
      %v725 = vmul.f32 %v703, -2.0
      %v726 = vmul.f32 %v704, -2.0
      %v727 = vmax.f32 %v725, 0.0
      %v728 = vmax.f32 %v726, 0.0
      %v729 = vand.u32 2147483647, %v725
      %v730 = vand.u32 2147483647, %v726
      %v731 = vsub.f32 0.0, %v729
      %v732 = vsub.f32 0.0, %v730
      %v733 = vmul.f32 %v731, 1.442695
      %v734 = vpow.pop %v733
      %v735 = vmul.f32 %v732, 1.442695
      %v736 = vpow.pop %v735
      %v737 = vadd.f32 %v734, 1.0
      %v738 = vlog2.pop %v737
      %v739 = vmul.f32 %v738, 0.6931472
      %v740 = vmul.f32 -0.5, %v734
      %v741 = vadd.f32 %v740, 1.0
      %v742 = vmul.f32 %v741, %v734
      %v743 = vand.u32 2147483647, %v734
      %vm744 = vcmp.lt.f32.partialorder %v743, 0.0004427343
      %v745 = vsel %vm744, %v742, %v739
      %v746 = vadd.f32 %v736, 1.0
      %v747 = vlog2.pop %v746
      %v748 = vmul.f32 %v747, 0.6931472
      %v749 = vmul.f32 -0.5, %v736
      %v750 = vadd.f32 %v749, 1.0
      %v751 = vmul.f32 %v750, %v736
      %v752 = vand.u32 2147483647, %v736
      %vm753 = vcmp.lt.f32.partialorder %v752, 0.0004427343
      %v754 = vsel %vm753, %v751, %v748
      %v755 = vadd.f32 %v727, %v745
      %v756 = vadd.f32 %v728, %v754
      %v757 = vsub.f32 %v723, %v755
      %v758 = vsub.f32 %v724, %v756
      %v759 = vmul.f32 %v757, 2.0
      %v760 = vmul.f32 %v758, 2.0
      %v761 = vld [vmem:[%s10] sm:$0x1]
      %v763 = vlaneseq
      %v764 = vshrl.u32 %v763, 7
      %v765 = vsub.s32 0, %v764
      %v766 = vrot.slane %v761, %v765
      %v768 = vsub.f32 %v721, %v766
      %v769 = vsub.f32 %v722, %v766
      %v770 = vsub.f32 %v768, %v759
      %v771 = vsub.f32 %v769, %v760
      %vm772 = vcmask 64512
      %v773 = vsel %vm772, %v770, 0.0
      %774 = vadd.xlane.f32.xlu0 %v773
      %v775 = vpop.xlane.xlu0 %774
      %v776 = vsel %vm772, %v771, 0.0
      %777 = vadd.xlane.f32.xlu0 %v776
      %v778 = vpop.xlane.xlu0 %777
      %779 = vst.msk [vmem:[%s410] sm:$0xff] %vm772, %v705
      %780 = vst.msk [vmem:[%s410 + $0x8] sm:$0xff] %vm772, %v706
      %vm781 = vcmask 72768
      %782 = vst.msk [vmem:[%s410] sm:$0xff] %vm781, %v775
      %783 = vst.msk [vmem:[%s410 + $0x8] sm:$0xff] %vm781, %v778
      %s784 = smul.u32 2, %s22
      %p785 = scmp.lt.s32.totalorder %s784, 3
      %s786 = scalar_select %p785, %s784, 3
      %s787 = smul.addr %s786, 8
      %s788 = scalar_lea.vmem %s11, %s787
      // Predicated region
      $region65: #{tpu_custom_call.1} parent=63 // pred_check
        %p789 = pneg %p281
      $region66: #{tpu_custom_call.1} parent=63 // pred_check_branch
        %791 = sbr.rel (%p789) target = $region68
      $region67: #{tpu_custom_call.1} parent=63 // pred_region
        %s792 = smul.u32 2, %s22
      $region68: #{tpu_custom_call.1} parent=63 // pred_fallthru
        _
    $region64: #{tpu_custom_call.1} parent=5 // pred_fallthru
      _
    %p793 = scmp.le.s32.totalorder 2, %s17
    // Predicated region
    $region69: #{tpu_custom_call.1} parent=5 // pred_check
      %p794 = pneg %p793
    $region70: #{tpu_custom_call.1} parent=5 // pred_check_branch
      %796 = sbr.rel (%p794) target = $region72
    $region71: #{tpu_custom_call.1} parent=5 // pred_region
      %s797 = ssub.s32 %s17, 2
      // Predicated region
      $region73: #{tpu_custom_call.1} parent=71 // pred_check
        %p798 = pneg %p287
      $region74: #{tpu_custom_call.1} parent=71 // pred_check_branch
        %800 = sbr.rel (%p798) target = $region76
      $region75: #{tpu_custom_call.1} parent=71 // pred_region
        %s801 = smul.u32 2, %s23
        %p802 = scmp.lt.s32.totalorder %s801, 3
        %s803 = scalar_select %p802, %s801, 3
        %s804 = smul.addr %s803, 8
        %s805 = scalar_lea.vmem %s11, %s804
      $region76: #{tpu_custom_call.1} parent=71 // pred_fallthru
        _
    $region72: #{tpu_custom_call.1} parent=5 // pred_fallthru
      _
  $region6: #{tpu_custom_call.1} parent=0 // loop_footer
    %s21 = sadd.s32 1, %s17
  $region7: #{tpu_custom_call.1} parent=0 // loop_footer_branch
    %16 = sbr.rel target = $region3
  $region8: #{tpu_custom_call.1} parent=0 // loop_exit
    _

</llo_original>
